<compile_context>
chip_gen: v7x
topology: tpu7x:2x2x1
jax: 0.10.0
libtpu: 0.0.40
codegen_flags: <defaults>
</compile_context>

<pallas_src>
import math

import jax
import jax.numpy as jnp
from jax.experimental import pallas as pl
from jax.experimental.pallas import tpu as pltpu

_MIB = 1024 * 1024


# ------------------------------- kernel body ---------------------------------

def _channel_same_kernel(x_ref, o_ref):
    # x_ref: (1, lblk)    — the single shared kernel row (or lane chunk of it);
    #                       constant index_map over the row axis => fetched once.
    # o_ref: (rblk, lblk) — one large lane-dense output slab per grid step.
    o_ref[...] = jnp.broadcast_to(x_ref[...], o_ref.shape)


# ----------------------------- sizing heuristics -------------------------------

def _tpu_budgets():
    """Generation-aware VMEM / block-size budgets (see header comment)."""
    try:
        vmem_cap = int(pltpu.get_tpu_info().vmem_capacity_bytes)
    except Exception:
        vmem_cap = 64 * _MIB  # conservative default: assume v7x-class per-TC VMEM
    if vmem_cap >= 128 * _MIB:  # v5e / v6e
        return dict(vmem_limit=64 * _MIB, max_block=24 * _MIB,
                    target_block=12 * _MIB, small=1 * _MIB)
    # v7x-class: 64 MiB per TC, much faster HBM -> higher Pallas/XLA crossover.
    return dict(vmem_limit=40 * _MIB, max_block=16 * _MIB,
                target_block=8 * _MIB, small=2 * _MIB)


def _sublane_tile(dtype) -> int:
    """Dtype-native sublane tile: 8 (f32), 16 (bf16/f16), 32 (int8/fp8)."""
    return 8 * max(1, 4 // jnp.dtype(dtype).itemsize)


def _group_factor(Q: int, CK: int) -> int:
    """Smallest g with (CK*g) % 128 == 0 and g | Q, else 1 (lane densification)."""
    if CK % 128 == 0:
        return 1
    need = 128 // math.gcd(CK, 128)
    return need if Q % need == 0 else 1


def _largest_divisor_leq(total: int, start: int, step: int) -> int:
    """Largest multiple of `step`, <= `start`, that divides `total` (bounded search).
    Returns 0 if none found within the search budget."""
    cand = (start // step) * step
    steps = 0
    while cand >= step and steps < 4096:
        if total % cand == 0:
            return cand
        cand -= step
        steps += 1
    return 0


def _pick_row_block(R: int, row_bytes: int, sublane: int, target_bytes: int) -> int:
    """Rows per output block: big (amortize the ~0.35us/step pipeline cost),
    sublane-tile aligned, >= 4 grid steps when possible (>= 2 blocks per v7x TC),
    preferring a divisor of R so every step is a full unmasked store."""
    if R <= sublane:
        return R
    rblk = max(sublane, (target_bytes // row_bytes) // sublane * sublane)
    if R >= 4 * sublane:
        rblk = min(rblk, max(sublane, (R // 4) // sublane * sublane))
    rblk = min(rblk, R)
    if rblk >= R:
        return R
    div = _largest_divisor_leq(R, rblk, sublane)
    if div >= max(sublane, rblk // 2):
        return div
    return rblk  # partial last block: Pallas boundary-masks it correctly.


# ------------------------------- host wrapper ---------------------------------

def channel_same(x: jax.Array, Q: int) -> jax.Array:
    """Pallas implementation of ChannelSame.forward.

    Args:
      x: array of shape (1, C, K) — the single shared conv kernel.
      Q: number of output channels to expand to.

    Returns:
      array of shape (Q, C, K), every slab identical to x[0].
    """
    assert x.ndim == 3 and x.shape[0] == 1, "expected weight of shape (1, C, K)"
    _, C, K = x.shape
    CK = C * K
    itemsize = jnp.dtype(x.dtype).itemsize
    total_bytes = Q * CK * itemsize

    budgets = _tpu_budgets()

    # Fast path: tiny weights — pallas_call fixed cost dwarfs the copy.
    if total_bytes <= budgets["small"] or Q < 2 or CK == 0:
        return jnp.broadcast_to(x, (Q, C, K))

    # Lane densification: fold g output rows into the lane axis so the block's
    # last dim is a multiple of 128 (unmasked stores) whenever possible.
    g = _group_factor(Q, CK)
    if g == 1 and CK % 128 != 0 and CK < 256:
        # No legal fold and narrow rows: masked-lane stores would waste most of
        # the store width — let XLA handle the broadcast.
        return jnp.broadcast_to(x, (Q, C, K))

    R = Q // g                  # output rows seen by the kernel
    L = g * CK                  # lane row length (multiple of 128 unless no legal g)
    row_bytes = L * itemsize
    sublane = _sublane_tile(x.dtype)

    # Single shared row, pre-grouped (tiny XLA op: g*CK elements).
    x_row = x.reshape(1, CK)
    if g > 1:
        x_row = jnp.tile(x_row, (1, g))

    common_params = dict(
        compiler_params=pltpu.CompilerParams(
            vmem_limit_bytes=budgets["vmem_limit"],
        ),
        cost_estimate=pl.CostEstimate(
            flops=0,
            transcendentals=0,
            bytes_accessed=(R * L + L) * itemsize,  # pure bandwidth op
        ),
    )

    if min(R, sublane) * row_bytes <= budgets["max_block"]:
        # ---------- 1-D grid over output rows (common case) ----------
        rblk = _pick_row_block(R, row_bytes, sublane, budgets["target_block"])
        grid = (pl.cdiv(R, rblk),)
        out2d = pl.pallas_call(
            _channel_same_kernel,
            out_shape=jax.ShapeDtypeStruct((R, L), x.dtype),
            grid=grid,
            in_specs=[
                # Constant index_map: the single input row is fetched once and
                # stays resident across every grid step.
                pl.BlockSpec((1, L), lambda r: (0, 0)),
            ],
            out_specs=pl.BlockSpec((rblk, L), lambda r: (r, 0)),
            **dict(common_params,
                   compiler_params=pltpu.CompilerParams(
                       dimension_semantics=("parallel",),
                       vmem_limit_bytes=budgets["vmem_limit"])),
        )(x_row)
    else:
        # ---------- 2-D (row, lane) grid for very wide rows (huge C*K) ----------
        rblk = min(R, sublane)
        lblk = max(128, (budgets["target_block"] // (rblk * itemsize)) // 128 * 128)
        lblk = min(lblk, L)
        if lblk < L:
            div = _largest_divisor_leq(L, lblk, 128)
            if div >= max(128, lblk // 2):
                lblk = div
        grid = (pl.cdiv(R, rblk), pl.cdiv(L, lblk))
        out2d = pl.pallas_call(
            _channel_same_kernel,
            out_shape=jax.ShapeDtypeStruct((R, L), x.dtype),
            grid=grid,
            in_specs=[
                # Input block only depends on the lane-chunk index (innermost
                # axis), so each chunk of the shared row is fetched once per
                # row block — negligible vs. the output write.
                pl.BlockSpec((1, lblk), lambda r, c: (0, c)),
            ],
            out_specs=pl.BlockSpec((rblk, lblk), lambda r, c: (r, c)),
            **dict(common_params,
                   compiler_params=pltpu.CompilerParams(
                       dimension_semantics=("parallel", "parallel"),
                       vmem_limit_bytes=budgets["vmem_limit"])),
        )(x_row)

    # (R, g*CK) row-major is exactly (Q, C, K) row-major: free reshape/view.
    # TODO(synk): the fastest use of this op is often to never materialize it
    # and broadcast the (1, C, K) weight inside the consuming convolution.
    return out2d.reshape(Q, C, K)


# ----------------------------------- test --------------------------------------

if __name__ == "__main__":
    key = jax.random.PRNGKey(0)

    # 1) Small case (typical Conv1d weight for this module): hits the
    #    jnp.broadcast_to fast path, where Pallas launch overhead would dominate.
    Q_s, C_s, K_s = 6, 4, 16
    x_small = jax.random.normal(key, (1, C_s, K_s), dtype=jnp.float32)
    out_small = jax.block_until_ready(channel_same(x_small, Q_s))
    ref_small = jnp.broadcast_to(x_small, (Q_s, C_s, K_s))
    assert out_small.shape == (Q_s, C_s, K_s) and out_small.dtype == x_small.dtype
    assert bool(jnp.all(out_small == ref_small)), "small-case mismatch"

    # 2) Pallas path, f32, lane width already a multiple of 128 (C*K = 128).
    #    8 MiB output -> above the fast-path crossover on every generation;
    #    grid of 4 parallel row-tiles (>= 2 per TC on v7x).
    Q_l, C_l, K_l = 16384, 8, 16
    x_large = jax.random.normal(jax.random.PRNGKey(0), (1, C_l, K_l),
                                dtype=jnp.float32)
    out_large = jax.block_until_ready(channel_same(x_large, Q_l))
    ref_large = jnp.broadcast_to(x_large, (Q_l, C_l, K_l))
    assert out_large.shape == (Q_l, C_l, K_l) and out_large.dtype == x_large.dtype
    assert bool(jnp.all(out_large == ref_large)), "large-case mismatch"

    # 3) Pallas path, bf16, awkward C*K = 96 -> g-fold by 4 to a 384-lane row,
    #    16-row (bf16) sublane tiles, divisor-of-R row block (no masked steps).
    Q_b, C_b, K_b = 48000, 4, 24
    x_bf16 = jax.random.normal(jax.random.PRNGKey(0), (1, C_b, K_b),
                               dtype=jnp.bfloat16)
    out_bf16 = jax.block_until_ready(channel_same(x_bf16, Q_b))
    ref_bf16 = jnp.broadcast_to(x_bf16, (Q_b, C_b, K_b))
    assert out_bf16.shape == (Q_b, C_b, K_b) and out_bf16.dtype == x_bf16.dtype
    assert bool(jnp.all(out_bf16 == ref_bf16)), "bf16-case mismatch"

    # 4) Very wide row (C*K = 1M f32 -> 4 MiB/row): exercises the 2-D
    #    (row, lane) grid instead of falling back to XLA.
    Q_w, C_w, K_w = 8, 8, 131072
    x_wide = jax.random.normal(jax.random.PRNGKey(0), (1, C_w, K_w),
                               dtype=jnp.float32)
    out_wide = jax.block_until_ready(channel_same(x_wide, Q_w))
    ref_wide = jnp.broadcast_to(x_wide, (Q_w, C_w, K_w))
    assert out_wide.shape == (Q_w, C_w, K_w) and out_wide.dtype == x_wide.dtype
    assert bool(jnp.all(out_wide == ref_wide)), "wide-case mismatch"

    print("KERNEL_OK")
</pallas_src>

<mosaic_0001>
module attributes {stable_mosaic.version = 11 : i64} {
  func.func @_channel_same_kernel(%arg0: i32, %arg1: memref<1x128xf32, #tpu.memory_space<vmem>>, %arg2: memref<4096x128xf32, #tpu.memory_space<vmem>>) attributes {dimension_semantics = [#tpu.dimension_semantics<parallel>], iteration_bounds = array<i64: 4>, scalar_prefetch = 0 : i64, scratch_operands = 0 : i64, tpu.core_type = #tpu.core_type<tc>, window_params = [{pipeline_mode = #tpu.pipeline_mode<synchronous>, transform_indices = @transform_0, window_bounds = array<i64: 1, 128>}, {transform_indices = @transform_1, window_bounds = array<i64: 4096, 128>}]} {
    %c0 = arith.constant 0 : index
    %c0_0 = arith.constant 0 : index
    %0 = vector.load %arg1[%c0, %c0_0] : memref<1x128xf32, #tpu.memory_space<vmem>>, vector<1x128xf32>
    %1 = vector.shape_cast %0 : vector<1x128xf32> to vector<1x128xf32>
    %2 = vector.broadcast %1 : vector<1x128xf32> to vector<4096x128xf32>
    %c0_1 = arith.constant 0 : index
    %c0_2 = arith.constant 0 : index
    %3 = vector.load %arg2[%c0_1, %c0_2] : memref<4096x128xf32, #tpu.memory_space<vmem>>, vector<4096x128xf32>
    tpu.vector_store %arg2[%c0_1, %c0_2], %2 {strides = array<i32>} : memref<4096x128xf32, #tpu.memory_space<vmem>>, vector<4096x128xf32>,
    return
  }
  func.func @transform_0(%arg0: i32) -> (i32, i32) {
    %c0_i32 = arith.constant 0 : i32
    %c0_i32_0 = arith.constant 0 : i32
    %c0_i32_1 = arith.constant 0 : i32
    return %c0_i32, %c0_i32_0 : i32, i32
  }
  func.func @transform_1(%arg0: i32) -> (i32, i32) {
    %c0_i32 = arith.constant 0 : i32
    %c0_i32_0 = arith.constant 0 : i32
    return %arg0, %c0_i32 : i32, i32
  }
}

</mosaic_0001>

<llo_original>
// kernel: tpu_custom_call.1
$region0: #{tpu_custom_call.1}
  #allocation0 [shape = 'u32[]', space=smem, size = 0x4, offset = 0x4, fixed_abs, tag = 'smem constant byte address 0x4 - core index']
  #allocation1 [shape = 'u32[144,128]{1,0:T(1,128)}', space=vmem, size = 0x12000, scoped, tag = 'internal scratch']
  %s0 = inlined_call_operand.hbm [shape: f32[1,128], index: 0, kind: input, shape index: {}]
  %s1 = inlined_call_operand.hbm [shape: f32[16384,128], index: 1, kind: output, shape index: {}]
  %s2 = sld [smem:[#allocation0]]
  $region41: #{tpu_custom_call.1} parent=0
    _
  %s4 = ssub.s32 1, %s2
  %s5 = scalar_select 0, %s4, %s2
  $region1: #{tpu_custom_call.1} parent=0
    #allocation2 [shape = 'u8[512]{0}', space=vmem, size = 0x400, scoped, tag = 'input window, operand 0, single buffered']
    #allocation3 [shape = 's32[2]{0}', space=sflag, size = 0x8, scoped, tag = 'scoped memory for tpu_custom_call.1']
    #allocation4 [shape = 's32[2]{0}', space=sflag, size = 0x8, scoped, tag = 'scoped memory for tpu_custom_call.1']
    #allocation5 [shape = 'u8[4194304]{0}', space=vmem, size = 0x400000, scoped, tag = 'output window, operand 0']
    %6 = vsyncpa [#allocation3], 0
    %7 = vsyncpa [#allocation4], 0
    %s8 = scalar_lea.sflag [#allocation4], 1
    %9 = vsyncpa %s8, 0
    loop: start=0, step=1, limit=6
    $region2: #{tpu_custom_call.1} parent=1 // loop_pre_header
      _
    $region3: #{tpu_custom_call.1} parent=1 // loop_header
      %s11 = sphi 0, %s15
      %p12 = scmp.ge.s32.totalorder %s11, 6
      %s19 = sphi 0, %s19
      %s21 = sphi 0, %s19
      %s22 = sphi 0, %s21
      %s36 = sphi 0, %s22
      %s42 = sphi 0, %s44
      %s45 = sphi 0, %s42
      %s46 = sphi 0, %s45
      %s62 = sphi 0, %s46
    $region4: #{tpu_custom_call.1} parent=1 // loop_header_branch
      %14 = sbr.rel (%p12) target = $region8
    $region5: #{tpu_custom_call.1} parent=1 // loop_body
      %s16 = ssub.s32 %s11, 1
      %s17 = ssub.s32 %s11, 2
      %s18 = sadd.s32 %s11, 1
      %s20 = sadd.s32 %s19, 1
      %p23 = scmp.eq.s32.totalorder %s11, 3
      %p24 = scmp.ne.s32.totalorder %s19, %s21
      %p25 = scmp.eq.s32.totalorder %s11, 0
      %p26 = por %p24, %p25
      %p27 = scmp.ne.s32.totalorder %s19, %s21
      %p28 = scmp.eq.s32.totalorder %s16, 3
      %p29 = por %p27, %p28
      %p30 = scmp.ne.s32.totalorder %s21, %s22
      %p31 = scmp.eq.s32.totalorder %s16, 0
      %p32 = por %p30, %p31
      %p33 = scmp.ne.s32.totalorder %s21, %s22
      %p34 = scmp.eq.s32.totalorder %s17, 3
      %p35 = por %p33, %p34
      %p37 = scmp.ne.s32.totalorder %s22, %s36
      %p38 = scmp.eq.s32.totalorder %s17, 0
      %p39 = por %p37, %p38
      %s40 = ssub.s32 %s11, %s18
      %p41 = scmp.eq.s32.totalorder %s40, 0
      %s43 = sadd.s32 %s42, 1
      %s44 = scalar_select %p41, %s42, %s43
      %p47 = pneg %p41
      %p48 = scmp.eq.s32.totalorder %s11, 3
      %p49 = por %p47, %p48
      %p50 = scmp.ne.s32.totalorder %s42, %s45
      %p51 = scmp.eq.s32.totalorder %s11, 0
      %p52 = por %p50, %p51
      %p53 = scmp.ne.s32.totalorder %s42, %s45
      %p54 = scmp.eq.s32.totalorder %s16, 3
      %p55 = por %p53, %p54
      %p56 = scmp.ne.s32.totalorder %s45, %s46
      %p57 = scmp.eq.s32.totalorder %s16, 0
      %p58 = por %p56, %p57
      %p59 = scmp.ne.s32.totalorder %s45, %s46
      %p60 = scmp.eq.s32.totalorder %s17, 3
      %p61 = por %p59, %p60
      %p63 = scmp.ne.s32.totalorder %s46, %s62
      %p64 = scmp.eq.s32.totalorder %s17, 0
      %p65 = por %p63, %p64
      %p66 = scmp.le.s32.totalorder 1, %s11
      %p67 = scmp.lt.s32.totalorder %s11, 5
      %p68 = pnand %p66, %p67
      %p69 = pneg %p68
      // Predicated region
      $region9: #{tpu_custom_call.1} parent=5 // pred_check
        _
      $region10: #{tpu_custom_call.1} parent=5 // pred_check_branch
        %71 = sbr.rel (%p68) target = $region12
      $region11: #{tpu_custom_call.1} parent=5 // pred_region
        %s72 = ssub.s32 %s11, 1
        // Predicated region
        $region13: #{tpu_custom_call.1} parent=11 // pred_check
          %p73 = pneg %p32
        $region14: #{tpu_custom_call.1} parent=11 // pred_check_branch
          %75 = sbr.rel (%p73) target = $region16
        $region15: #{tpu_custom_call.1} parent=11 // pred_region
          %s77 = ssub.s32 16, 16
          %78 = vsyncadd [#allocation3], %s77
          %s80 = sshll.u32 [#allocation2], 4
          %s81 = int_to_ptr.vmem [resolvable:$true] %s80
          %83 = dma.hbm_to_vmem [thread:$0]  %s0, 16, %s81, [#allocation3]
        $region16: #{tpu_custom_call.1} parent=11 // pred_fallthru
          _
      $region12: #{tpu_custom_call.1} parent=5 // pred_fallthru
        _
      %p84 = scmp.lt.s32.totalorder %s11, 4
      // Predicated region
      $region17: #{tpu_custom_call.1} parent=5 // pred_check
        %p85 = pneg %p84
      $region18: #{tpu_custom_call.1} parent=5 // pred_check_branch
        %87 = sbr.rel (%p85) target = $region20
      $region19: #{tpu_custom_call.1} parent=5 // pred_region
        _
      $region20: #{tpu_custom_call.1} parent=5 // pred_fallthru
        _
      %p88 = scmp.le.s32.totalorder 1, %s11
      %p89 = scmp.lt.s32.totalorder %s11, 5
      %p90 = pnand %p88, %p89
      %p91 = pneg %p90
      // Predicated region
      $region21: #{tpu_custom_call.1} parent=5 // pred_check
        _
      $region22: #{tpu_custom_call.1} parent=5 // pred_check_branch
        %93 = sbr.rel (%p90) target = $region24
      $region23: #{tpu_custom_call.1} parent=5 // pred_region
        %s94 = ssub.s32 %s11, 1
        // Predicated region
        $region25: #{tpu_custom_call.1} parent=23 // pred_check
          %p95 = pneg %p32
        $region26: #{tpu_custom_call.1} parent=23 // pred_check_branch
          %97 = sbr.rel (%p95) target = $region28
        $region27: #{tpu_custom_call.1} parent=23 // pred_region
          %98 = dma.done [#allocation3], 16
        $region28: #{tpu_custom_call.1} parent=23 // pred_fallthru
          _
        %p99 = pneg %p32
        %p100 = pneg %p29
        %p101 = pneg %p58
        %p102 = pneg %p55
        %s103 = sand.u32 %s45, 1
        %s104 = scalar_lea.sflag [#allocation4], %s103
        %s105 = sand.u32 %s45, 1
        %s106 = smul.addr %s105, 4096
        %s107 = scalar_lea.vmem [#allocation5], %s106
        %s108 = smul.u32 512, %s16
        %v109 = vld [vmem:[#allocation2] sm:$0x1]
        %v111 = vlaneseq
        %v112 = vshrl.u32 %v111, 7
        %v113 = vsub.s32 0, %v112
        %v114 = vrot.slane %v109, %v113
        %116 = vst [vmem:[%s107] sm:$0xff] %v114
        %117 = vst [vmem:[%s107 + $0x8] sm:$0xff] %v114
        %118 = vst [vmem:[%s107 + $0x10] sm:$0xff] %v114
        %119 = vst [vmem:[%s107 + $0x18] sm:$0xff] %v114
        %120 = vst [vmem:[%s107 + $0x20] sm:$0xff] %v114
        %121 = vst [vmem:[%s107 + $0x28] sm:$0xff] %v114
        %122 = vst [vmem:[%s107 + $0x30] sm:$0xff] %v114
        %123 = vst [vmem:[%s107 + $0x38] sm:$0xff] %v114
        %124 = vst [vmem:[%s107 + $0x40] sm:$0xff] %v114
        %125 = vst [vmem:[%s107 + $0x48] sm:$0xff] %v114
        %126 = vst [vmem:[%s107 + $0x50] sm:$0xff] %v114
        %127 = vst [vmem:[%s107 + $0x58] sm:$0xff] %v114
        %128 = vst [vmem:[%s107 + $0x60] sm:$0xff] %v114
        %129 = vst [vmem:[%s107 + $0x68] sm:$0xff] %v114
        %130 = vst [vmem:[%s107 + $0x70] sm:$0xff] %v114
        %131 = vst [vmem:[%s107 + $0x78] sm:$0xff] %v114
        %132 = vst [vmem:[%s107 + $0x80] sm:$0xff] %v114
        %133 = vst [vmem:[%s107 + $0x88] sm:$0xff] %v114
        %134 = vst [vmem:[%s107 + $0x90] sm:$0xff] %v114
        %135 = vst [vmem:[%s107 + $0x98] sm:$0xff] %v114
        %136 = vst [vmem:[%s107 + $0xa0] sm:$0xff] %v114
        %137 = vst [vmem:[%s107 + $0xa8] sm:$0xff] %v114
        %138 = vst [vmem:[%s107 + $0xb0] sm:$0xff] %v114
        %139 = vst [vmem:[%s107 + $0xb8] sm:$0xff] %v114
        %140 = vst [vmem:[%s107 + $0xc0] sm:$0xff] %v114
        %141 = vst [vmem:[%s107 + $0xc8] sm:$0xff] %v114
        %142 = vst [vmem:[%s107 + $0xd0] sm:$0xff] %v114
        %143 = vst [vmem:[%s107 + $0xd8] sm:$0xff] %v114
        %144 = vst [vmem:[%s107 + $0xe0] sm:$0xff] %v114
        %145 = vst [vmem:[%s107 + $0xe8] sm:$0xff] %v114
        %146 = vst [vmem:[%s107 + $0xf0] sm:$0xff] %v114
        %147 = vst [vmem:[%s107 + $0xf8] sm:$0xff] %v114
        %148 = vst [vmem:[%s107 + $0x100] sm:$0xff] %v114
        %149 = vst [vmem:[%s107 + $0x108] sm:$0xff] %v114
        %150 = vst [vmem:[%s107 + $0x110] sm:$0xff] %v114
        %151 = vst [vmem:[%s107 + $0x118] sm:$0xff] %v114
        %152 = vst [vmem:[%s107 + $0x120] sm:$0xff] %v114
        %153 = vst [vmem:[%s107 + $0x128] sm:$0xff] %v114
        %154 = vst [vmem:[%s107 + $0x130] sm:$0xff] %v114
        %155 = vst [vmem:[%s107 + $0x138] sm:$0xff] %v114
        %156 = vst [vmem:[%s107 + $0x140] sm:$0xff] %v114
        %157 = vst [vmem:[%s107 + $0x148] sm:$0xff] %v114
        %158 = vst [vmem:[%s107 + $0x150] sm:$0xff] %v114
        %159 = vst [vmem:[%s107 + $0x158] sm:$0xff] %v114
        %160 = vst [vmem:[%s107 + $0x160] sm:$0xff] %v114
        %161 = vst [vmem:[%s107 + $0x168] sm:$0xff] %v114
        %162 = vst [vmem:[%s107 + $0x170] sm:$0xff] %v114
        %163 = vst [vmem:[%s107 + $0x178] sm:$0xff] %v114
        %164 = vst [vmem:[%s107 + $0x180] sm:$0xff] %v114
        %165 = vst [vmem:[%s107 + $0x188] sm:$0xff] %v114
        %166 = vst [vmem:[%s107 + $0x190] sm:$0xff] %v114
        %167 = vst [vmem:[%s107 + $0x198] sm:$0xff] %v114
        %168 = vst [vmem:[%s107 + $0x1a0] sm:$0xff] %v114
        %169 = vst [vmem:[%s107 + $0x1a8] sm:$0xff] %v114
        %170 = vst [vmem:[%s107 + $0x1b0] sm:$0xff] %v114
        %171 = vst [vmem:[%s107 + $0x1b8] sm:$0xff] %v114
        %172 = vst [vmem:[%s107 + $0x1c0] sm:$0xff] %v114
        %173 = vst [vmem:[%s107 + $0x1c8] sm:$0xff] %v114
        %174 = vst [vmem:[%s107 + $0x1d0] sm:$0xff] %v114
        %175 = vst [vmem:[%s107 + $0x1d8] sm:$0xff] %v114
        %176 = vst [vmem:[%s107 + $0x1e0] sm:$0xff] %v114
        %177 = vst [vmem:[%s107 + $0x1e8] sm:$0xff] %v114
        %178 = vst [vmem:[%s107 + $0x1f0] sm:$0xff] %v114
        %179 = vst [vmem:[%s107 + $0x1f8] sm:$0xff] %v114
        %180 = vst [vmem:[%s107 + $0x200] sm:$0xff] %v114
        %181 = vst [vmem:[%s107 + $0x208] sm:$0xff] %v114
        %182 = vst [vmem:[%s107 + $0x210] sm:$0xff] %v114
        %183 = vst [vmem:[%s107 + $0x218] sm:$0xff] %v114
        %184 = vst [vmem:[%s107 + $0x220] sm:$0xff] %v114
        %185 = vst [vmem:[%s107 + $0x228] sm:$0xff] %v114
        %186 = vst [vmem:[%s107 + $0x230] sm:$0xff] %v114
        %187 = vst [vmem:[%s107 + $0x238] sm:$0xff] %v114
        %188 = vst [vmem:[%s107 + $0x240] sm:$0xff] %v114
        %189 = vst [vmem:[%s107 + $0x248] sm:$0xff] %v114
        %190 = vst [vmem:[%s107 + $0x250] sm:$0xff] %v114
        %191 = vst [vmem:[%s107 + $0x258] sm:$0xff] %v114
        %192 = vst [vmem:[%s107 + $0x260] sm:$0xff] %v114
        %193 = vst [vmem:[%s107 + $0x268] sm:$0xff] %v114
        %194 = vst [vmem:[%s107 + $0x270] sm:$0xff] %v114
        %195 = vst [vmem:[%s107 + $0x278] sm:$0xff] %v114
        %196 = vst [vmem:[%s107 + $0x280] sm:$0xff] %v114
        %197 = vst [vmem:[%s107 + $0x288] sm:$0xff] %v114
        %198 = vst [vmem:[%s107 + $0x290] sm:$0xff] %v114
        %199 = vst [vmem:[%s107 + $0x298] sm:$0xff] %v114
        %200 = vst [vmem:[%s107 + $0x2a0] sm:$0xff] %v114
        %201 = vst [vmem:[%s107 + $0x2a8] sm:$0xff] %v114
        %202 = vst [vmem:[%s107 + $0x2b0] sm:$0xff] %v114
        %203 = vst [vmem:[%s107 + $0x2b8] sm:$0xff] %v114
        %204 = vst [vmem:[%s107 + $0x2c0] sm:$0xff] %v114
        %205 = vst [vmem:[%s107 + $0x2c8] sm:$0xff] %v114
        %206 = vst [vmem:[%s107 + $0x2d0] sm:$0xff] %v114
        %207 = vst [vmem:[%s107 + $0x2d8] sm:$0xff] %v114
        %208 = vst [vmem:[%s107 + $0x2e0] sm:$0xff] %v114
        %209 = vst [vmem:[%s107 + $0x2e8] sm:$0xff] %v114
        %210 = vst [vmem:[%s107 + $0x2f0] sm:$0xff] %v114
        %211 = vst [vmem:[%s107 + $0x2f8] sm:$0xff] %v114
        %212 = vst [vmem:[%s107 + $0x300] sm:$0xff] %v114
        %213 = vst [vmem:[%s107 + $0x308] sm:$0xff] %v114
        %214 = vst [vmem:[%s107 + $0x310] sm:$0xff] %v114
        %215 = vst [vmem:[%s107 + $0x318] sm:$0xff] %v114
        %216 = vst [vmem:[%s107 + $0x320] sm:$0xff] %v114
        %217 = vst [vmem:[%s107 + $0x328] sm:$0xff] %v114
        %218 = vst [vmem:[%s107 + $0x330] sm:$0xff] %v114
        %219 = vst [vmem:[%s107 + $0x338] sm:$0xff] %v114
        %220 = vst [vmem:[%s107 + $0x340] sm:$0xff] %v114
        %221 = vst [vmem:[%s107 + $0x348] sm:$0xff] %v114
        %222 = vst [vmem:[%s107 + $0x350] sm:$0xff] %v114
        %223 = vst [vmem:[%s107 + $0x358] sm:$0xff] %v114
        %224 = vst [vmem:[%s107 + $0x360] sm:$0xff] %v114
        %225 = vst [vmem:[%s107 + $0x368] sm:$0xff] %v114
        %226 = vst [vmem:[%s107 + $0x370] sm:$0xff] %v114
        %227 = vst [vmem:[%s107 + $0x378] sm:$0xff] %v114
        %228 = vst [vmem:[%s107 + $0x380] sm:$0xff] %v114
        %229 = vst [vmem:[%s107 + $0x388] sm:$0xff] %v114
        %230 = vst [vmem:[%s107 + $0x390] sm:$0xff] %v114
        %231 = vst [vmem:[%s107 + $0x398] sm:$0xff] %v114
        %232 = vst [vmem:[%s107 + $0x3a0] sm:$0xff] %v114
        %233 = vst [vmem:[%s107 + $0x3a8] sm:$0xff] %v114
        %234 = vst [vmem:[%s107 + $0x3b0] sm:$0xff] %v114
        %235 = vst [vmem:[%s107 + $0x3b8] sm:$0xff] %v114
        %236 = vst [vmem:[%s107 + $0x3c0] sm:$0xff] %v114
        %237 = vst [vmem:[%s107 + $0x3c8] sm:$0xff] %v114
        %238 = vst [vmem:[%s107 + $0x3d0] sm:$0xff] %v114
        %239 = vst [vmem:[%s107 + $0x3d8] sm:$0xff] %v114
        %240 = vst [vmem:[%s107 + $0x3e0] sm:$0xff] %v114
        %241 = vst [vmem:[%s107 + $0x3e8] sm:$0xff] %v114
        %242 = vst [vmem:[%s107 + $0x3f0] sm:$0xff] %v114
        %243 = vst [vmem:[%s107 + $0x3f8] sm:$0xff] %v114
        %244 = vst [vmem:[%s107 + $0x400] sm:$0xff] %v114
        %245 = vst [vmem:[%s107 + $0x408] sm:$0xff] %v114
        %246 = vst [vmem:[%s107 + $0x410] sm:$0xff] %v114
        %247 = vst [vmem:[%s107 + $0x418] sm:$0xff] %v114
        %248 = vst [vmem:[%s107 + $0x420] sm:$0xff] %v114
        %249 = vst [vmem:[%s107 + $0x428] sm:$0xff] %v114
        %250 = vst [vmem:[%s107 + $0x430] sm:$0xff] %v114
        %251 = vst [vmem:[%s107 + $0x438] sm:$0xff] %v114
        %252 = vst [vmem:[%s107 + $0x440] sm:$0xff] %v114
        %253 = vst [vmem:[%s107 + $0x448] sm:$0xff] %v114
        %254 = vst [vmem:[%s107 + $0x450] sm:$0xff] %v114
        %255 = vst [vmem:[%s107 + $0x458] sm:$0xff] %v114
        %256 = vst [vmem:[%s107 + $0x460] sm:$0xff] %v114
        %257 = vst [vmem:[%s107 + $0x468] sm:$0xff] %v114
        %258 = vst [vmem:[%s107 + $0x470] sm:$0xff] %v114
        %259 = vst [vmem:[%s107 + $0x478] sm:$0xff] %v114
        %260 = vst [vmem:[%s107 + $0x480] sm:$0xff] %v114
        %261 = vst [vmem:[%s107 + $0x488] sm:$0xff] %v114
        %262 = vst [vmem:[%s107 + $0x490] sm:$0xff] %v114
        %263 = vst [vmem:[%s107 + $0x498] sm:$0xff] %v114
        %264 = vst [vmem:[%s107 + $0x4a0] sm:$0xff] %v114
        %265 = vst [vmem:[%s107 + $0x4a8] sm:$0xff] %v114
        %266 = vst [vmem:[%s107 + $0x4b0] sm:$0xff] %v114
        %267 = vst [vmem:[%s107 + $0x4b8] sm:$0xff] %v114
        %268 = vst [vmem:[%s107 + $0x4c0] sm:$0xff] %v114
        %269 = vst [vmem:[%s107 + $0x4c8] sm:$0xff] %v114
        %270 = vst [vmem:[%s107 + $0x4d0] sm:$0xff] %v114
        %271 = vst [vmem:[%s107 + $0x4d8] sm:$0xff] %v114
        %272 = vst [vmem:[%s107 + $0x4e0] sm:$0xff] %v114
        %273 = vst [vmem:[%s107 + $0x4e8] sm:$0xff] %v114
        %274 = vst [vmem:[%s107 + $0x4f0] sm:$0xff] %v114
        %275 = vst [vmem:[%s107 + $0x4f8] sm:$0xff] %v114
        %276 = vst [vmem:[%s107 + $0x500] sm:$0xff] %v114
        %277 = vst [vmem:[%s107 + $0x508] sm:$0xff] %v114
        %278 = vst [vmem:[%s107 + $0x510] sm:$0xff] %v114
        %279 = vst [vmem:[%s107 + $0x518] sm:$0xff] %v114
        %280 = vst [vmem:[%s107 + $0x520] sm:$0xff] %v114
        %281 = vst [vmem:[%s107 + $0x528] sm:$0xff] %v114
        %282 = vst [vmem:[%s107 + $0x530] sm:$0xff] %v114
        %283 = vst [vmem:[%s107 + $0x538] sm:$0xff] %v114
        %284 = vst [vmem:[%s107 + $0x540] sm:$0xff] %v114
        %285 = vst [vmem:[%s107 + $0x548] sm:$0xff] %v114
        %286 = vst [vmem:[%s107 + $0x550] sm:$0xff] %v114
        %287 = vst [vmem:[%s107 + $0x558] sm:$0xff] %v114
        %288 = vst [vmem:[%s107 + $0x560] sm:$0xff] %v114
        %289 = vst [vmem:[%s107 + $0x568] sm:$0xff] %v114
        %290 = vst [vmem:[%s107 + $0x570] sm:$0xff] %v114
        %291 = vst [vmem:[%s107 + $0x578] sm:$0xff] %v114
        %292 = vst [vmem:[%s107 + $0x580] sm:$0xff] %v114
        %293 = vst [vmem:[%s107 + $0x588] sm:$0xff] %v114
        %294 = vst [vmem:[%s107 + $0x590] sm:$0xff] %v114
        %295 = vst [vmem:[%s107 + $0x598] sm:$0xff] %v114
        %296 = vst [vmem:[%s107 + $0x5a0] sm:$0xff] %v114
        %297 = vst [vmem:[%s107 + $0x5a8] sm:$0xff] %v114
        %298 = vst [vmem:[%s107 + $0x5b0] sm:$0xff] %v114
        %299 = vst [vmem:[%s107 + $0x5b8] sm:$0xff] %v114
        %300 = vst [vmem:[%s107 + $0x5c0] sm:$0xff] %v114
        %301 = vst [vmem:[%s107 + $0x5c8] sm:$0xff] %v114
        %302 = vst [vmem:[%s107 + $0x5d0] sm:$0xff] %v114
        %303 = vst [vmem:[%s107 + $0x5d8] sm:$0xff] %v114
        %304 = vst [vmem:[%s107 + $0x5e0] sm:$0xff] %v114
        %305 = vst [vmem:[%s107 + $0x5e8] sm:$0xff] %v114
        %306 = vst [vmem:[%s107 + $0x5f0] sm:$0xff] %v114
        %307 = vst [vmem:[%s107 + $0x5f8] sm:$0xff] %v114
        %308 = vst [vmem:[%s107 + $0x600] sm:$0xff] %v114
        %309 = vst [vmem:[%s107 + $0x608] sm:$0xff] %v114
        %310 = vst [vmem:[%s107 + $0x610] sm:$0xff] %v114
        %311 = vst [vmem:[%s107 + $0x618] sm:$0xff] %v114
        %312 = vst [vmem:[%s107 + $0x620] sm:$0xff] %v114
        %313 = vst [vmem:[%s107 + $0x628] sm:$0xff] %v114
        %314 = vst [vmem:[%s107 + $0x630] sm:$0xff] %v114
        %315 = vst [vmem:[%s107 + $0x638] sm:$0xff] %v114
        %316 = vst [vmem:[%s107 + $0x640] sm:$0xff] %v114
        %317 = vst [vmem:[%s107 + $0x648] sm:$0xff] %v114
        %318 = vst [vmem:[%s107 + $0x650] sm:$0xff] %v114
        %319 = vst [vmem:[%s107 + $0x658] sm:$0xff] %v114
        %320 = vst [vmem:[%s107 + $0x660] sm:$0xff] %v114
        %321 = vst [vmem:[%s107 + $0x668] sm:$0xff] %v114
        %322 = vst [vmem:[%s107 + $0x670] sm:$0xff] %v114
        %323 = vst [vmem:[%s107 + $0x678] sm:$0xff] %v114
        %324 = vst [vmem:[%s107 + $0x680] sm:$0xff] %v114
        %325 = vst [vmem:[%s107 + $0x688] sm:$0xff] %v114
        %326 = vst [vmem:[%s107 + $0x690] sm:$0xff] %v114
        %327 = vst [vmem:[%s107 + $0x698] sm:$0xff] %v114
        %328 = vst [vmem:[%s107 + $0x6a0] sm:$0xff] %v114
        %329 = vst [vmem:[%s107 + $0x6a8] sm:$0xff] %v114
        %330 = vst [vmem:[%s107 + $0x6b0] sm:$0xff] %v114
        %331 = vst [vmem:[%s107 + $0x6b8] sm:$0xff] %v114
        %332 = vst [vmem:[%s107 + $0x6c0] sm:$0xff] %v114
        %333 = vst [vmem:[%s107 + $0x6c8] sm:$0xff] %v114
        %334 = vst [vmem:[%s107 + $0x6d0] sm:$0xff] %v114
        %335 = vst [vmem:[%s107 + $0x6d8] sm:$0xff] %v114
        %336 = vst [vmem:[%s107 + $0x6e0] sm:$0xff] %v114
        %337 = vst [vmem:[%s107 + $0x6e8] sm:$0xff] %v114
        %338 = vst [vmem:[%s107 + $0x6f0] sm:$0xff] %v114
        %339 = vst [vmem:[%s107 + $0x6f8] sm:$0xff] %v114
        %340 = vst [vmem:[%s107 + $0x700] sm:$0xff] %v114
        %341 = vst [vmem:[%s107 + $0x708] sm:$0xff] %v114
        %342 = vst [vmem:[%s107 + $0x710] sm:$0xff] %v114
        %343 = vst [vmem:[%s107 + $0x718] sm:$0xff] %v114
        %344 = vst [vmem:[%s107 + $0x720] sm:$0xff] %v114
        %345 = vst [vmem:[%s107 + $0x728] sm:$0xff] %v114
        %346 = vst [vmem:[%s107 + $0x730] sm:$0xff] %v114
        %347 = vst [vmem:[%s107 + $0x738] sm:$0xff] %v114
        %348 = vst [vmem:[%s107 + $0x740] sm:$0xff] %v114
        %349 = vst [vmem:[%s107 + $0x748] sm:$0xff] %v114
        %350 = vst [vmem:[%s107 + $0x750] sm:$0xff] %v114
        %351 = vst [vmem:[%s107 + $0x758] sm:$0xff] %v114
        %352 = vst [vmem:[%s107 + $0x760] sm:$0xff] %v114
        %353 = vst [vmem:[%s107 + $0x768] sm:$0xff] %v114
        %354 = vst [vmem:[%s107 + $0x770] sm:$0xff] %v114
        %355 = vst [vmem:[%s107 + $0x778] sm:$0xff] %v114
        %356 = vst [vmem:[%s107 + $0x780] sm:$0xff] %v114
        %357 = vst [vmem:[%s107 + $0x788] sm:$0xff] %v114
        %358 = vst [vmem:[%s107 + $0x790] sm:$0xff] %v114
        %359 = vst [vmem:[%s107 + $0x798] sm:$0xff] %v114
        %360 = vst [vmem:[%s107 + $0x7a0] sm:$0xff] %v114
        %361 = vst [vmem:[%s107 + $0x7a8] sm:$0xff] %v114
        %362 = vst [vmem:[%s107 + $0x7b0] sm:$0xff] %v114
        %363 = vst [vmem:[%s107 + $0x7b8] sm:$0xff] %v114
        %364 = vst [vmem:[%s107 + $0x7c0] sm:$0xff] %v114
        %365 = vst [vmem:[%s107 + $0x7c8] sm:$0xff] %v114
        %366 = vst [vmem:[%s107 + $0x7d0] sm:$0xff] %v114
        %367 = vst [vmem:[%s107 + $0x7d8] sm:$0xff] %v114
        %368 = vst [vmem:[%s107 + $0x7e0] sm:$0xff] %v114
        %369 = vst [vmem:[%s107 + $0x7e8] sm:$0xff] %v114
        %370 = vst [vmem:[%s107 + $0x7f0] sm:$0xff] %v114
        %371 = vst [vmem:[%s107 + $0x7f8] sm:$0xff] %v114
        %372 = vst [vmem:[%s107 + $0x800] sm:$0xff] %v114
        %373 = vst [vmem:[%s107 + $0x808] sm:$0xff] %v114
        %374 = vst [vmem:[%s107 + $0x810] sm:$0xff] %v114
        %375 = vst [vmem:[%s107 + $0x818] sm:$0xff] %v114
        %376 = vst [vmem:[%s107 + $0x820] sm:$0xff] %v114
        %377 = vst [vmem:[%s107 + $0x828] sm:$0xff] %v114
        %378 = vst [vmem:[%s107 + $0x830] sm:$0xff] %v114
        %379 = vst [vmem:[%s107 + $0x838] sm:$0xff] %v114
        %380 = vst [vmem:[%s107 + $0x840] sm:$0xff] %v114
        %381 = vst [vmem:[%s107 + $0x848] sm:$0xff] %v114
        %382 = vst [vmem:[%s107 + $0x850] sm:$0xff] %v114
        %383 = vst [vmem:[%s107 + $0x858] sm:$0xff] %v114
        %384 = vst [vmem:[%s107 + $0x860] sm:$0xff] %v114
        %385 = vst [vmem:[%s107 + $0x868] sm:$0xff] %v114
        %386 = vst [vmem:[%s107 + $0x870] sm:$0xff] %v114
        %387 = vst [vmem:[%s107 + $0x878] sm:$0xff] %v114
        %388 = vst [vmem:[%s107 + $0x880] sm:$0xff] %v114
        %389 = vst [vmem:[%s107 + $0x888] sm:$0xff] %v114
        %390 = vst [vmem:[%s107 + $0x890] sm:$0xff] %v114
        %391 = vst [vmem:[%s107 + $0x898] sm:$0xff] %v114
        %392 = vst [vmem:[%s107 + $0x8a0] sm:$0xff] %v114
        %393 = vst [vmem:[%s107 + $0x8a8] sm:$0xff] %v114
        %394 = vst [vmem:[%s107 + $0x8b0] sm:$0xff] %v114
        %395 = vst [vmem:[%s107 + $0x8b8] sm:$0xff] %v114
        %396 = vst [vmem:[%s107 + $0x8c0] sm:$0xff] %v114
        %397 = vst [vmem:[%s107 + $0x8c8] sm:$0xff] %v114
        %398 = vst [vmem:[%s107 + $0x8d0] sm:$0xff] %v114
        %399 = vst [vmem:[%s107 + $0x8d8] sm:$0xff] %v114
        %400 = vst [vmem:[%s107 + $0x8e0] sm:$0xff] %v114
        %401 = vst [vmem:[%s107 + $0x8e8] sm:$0xff] %v114
        %402 = vst [vmem:[%s107 + $0x8f0] sm:$0xff] %v114
        %403 = vst [vmem:[%s107 + $0x8f8] sm:$0xff] %v114
        %404 = vst [vmem:[%s107 + $0x900] sm:$0xff] %v114
        %405 = vst [vmem:[%s107 + $0x908] sm:$0xff] %v114
        %406 = vst [vmem:[%s107 + $0x910] sm:$0xff] %v114
        %407 = vst [vmem:[%s107 + $0x918] sm:$0xff] %v114
        %408 = vst [vmem:[%s107 + $0x920] sm:$0xff] %v114
        %409 = vst [vmem:[%s107 + $0x928] sm:$0xff] %v114
        %410 = vst [vmem:[%s107 + $0x930] sm:$0xff] %v114
        %411 = vst [vmem:[%s107 + $0x938] sm:$0xff] %v114
        %412 = vst [vmem:[%s107 + $0x940] sm:$0xff] %v114
        %413 = vst [vmem:[%s107 + $0x948] sm:$0xff] %v114
        %414 = vst [vmem:[%s107 + $0x950] sm:$0xff] %v114
        %415 = vst [vmem:[%s107 + $0x958] sm:$0xff] %v114
        %416 = vst [vmem:[%s107 + $0x960] sm:$0xff] %v114
        %417 = vst [vmem:[%s107 + $0x968] sm:$0xff] %v114
        %418 = vst [vmem:[%s107 + $0x970] sm:$0xff] %v114
        %419 = vst [vmem:[%s107 + $0x978] sm:$0xff] %v114
        %420 = vst [vmem:[%s107 + $0x980] sm:$0xff] %v114
        %421 = vst [vmem:[%s107 + $0x988] sm:$0xff] %v114
        %422 = vst [vmem:[%s107 + $0x990] sm:$0xff] %v114
        %423 = vst [vmem:[%s107 + $0x998] sm:$0xff] %v114
        %424 = vst [vmem:[%s107 + $0x9a0] sm:$0xff] %v114
        %425 = vst [vmem:[%s107 + $0x9a8] sm:$0xff] %v114
        %426 = vst [vmem:[%s107 + $0x9b0] sm:$0xff] %v114
        %427 = vst [vmem:[%s107 + $0x9b8] sm:$0xff] %v114
        %428 = vst [vmem:[%s107 + $0x9c0] sm:$0xff] %v114
        %429 = vst [vmem:[%s107 + $0x9c8] sm:$0xff] %v114
        %430 = vst [vmem:[%s107 + $0x9d0] sm:$0xff] %v114
        %431 = vst [vmem:[%s107 + $0x9d8] sm:$0xff] %v114
        %432 = vst [vmem:[%s107 + $0x9e0] sm:$0xff] %v114
        %433 = vst [vmem:[%s107 + $0x9e8] sm:$0xff] %v114
        %434 = vst [vmem:[%s107 + $0x9f0] sm:$0xff] %v114
        %435 = vst [vmem:[%s107 + $0x9f8] sm:$0xff] %v114
        %436 = vst [vmem:[%s107 + $0xa00] sm:$0xff] %v114
        %437 = vst [vmem:[%s107 + $0xa08] sm:$0xff] %v114
        %438 = vst [vmem:[%s107 + $0xa10] sm:$0xff] %v114
        %439 = vst [vmem:[%s107 + $0xa18] sm:$0xff] %v114
        %440 = vst [vmem:[%s107 + $0xa20] sm:$0xff] %v114
        %441 = vst [vmem:[%s107 + $0xa28] sm:$0xff] %v114
        %442 = vst [vmem:[%s107 + $0xa30] sm:$0xff] %v114
        %443 = vst [vmem:[%s107 + $0xa38] sm:$0xff] %v114
        %444 = vst [vmem:[%s107 + $0xa40] sm:$0xff] %v114
        %445 = vst [vmem:[%s107 + $0xa48] sm:$0xff] %v114
        %446 = vst [vmem:[%s107 + $0xa50] sm:$0xff] %v114
        %447 = vst [vmem:[%s107 + $0xa58] sm:$0xff] %v114
        %448 = vst [vmem:[%s107 + $0xa60] sm:$0xff] %v114
        %449 = vst [vmem:[%s107 + $0xa68] sm:$0xff] %v114
        %450 = vst [vmem:[%s107 + $0xa70] sm:$0xff] %v114
        %451 = vst [vmem:[%s107 + $0xa78] sm:$0xff] %v114
        %452 = vst [vmem:[%s107 + $0xa80] sm:$0xff] %v114
        %453 = vst [vmem:[%s107 + $0xa88] sm:$0xff] %v114
        %454 = vst [vmem:[%s107 + $0xa90] sm:$0xff] %v114
        %455 = vst [vmem:[%s107 + $0xa98] sm:$0xff] %v114
        %456 = vst [vmem:[%s107 + $0xaa0] sm:$0xff] %v114
        %457 = vst [vmem:[%s107 + $0xaa8] sm:$0xff] %v114
        %458 = vst [vmem:[%s107 + $0xab0] sm:$0xff] %v114
        %459 = vst [vmem:[%s107 + $0xab8] sm:$0xff] %v114
        %460 = vst [vmem:[%s107 + $0xac0] sm:$0xff] %v114
        %461 = vst [vmem:[%s107 + $0xac8] sm:$0xff] %v114
        %462 = vst [vmem:[%s107 + $0xad0] sm:$0xff] %v114
        %463 = vst [vmem:[%s107 + $0xad8] sm:$0xff] %v114
        %464 = vst [vmem:[%s107 + $0xae0] sm:$0xff] %v114
        %465 = vst [vmem:[%s107 + $0xae8] sm:$0xff] %v114
        %466 = vst [vmem:[%s107 + $0xaf0] sm:$0xff] %v114
        %467 = vst [vmem:[%s107 + $0xaf8] sm:$0xff] %v114
        %468 = vst [vmem:[%s107 + $0xb00] sm:$0xff] %v114
        %469 = vst [vmem:[%s107 + $0xb08] sm:$0xff] %v114
        %470 = vst [vmem:[%s107 + $0xb10] sm:$0xff] %v114
        %471 = vst [vmem:[%s107 + $0xb18] sm:$0xff] %v114
        %472 = vst [vmem:[%s107 + $0xb20] sm:$0xff] %v114
        %473 = vst [vmem:[%s107 + $0xb28] sm:$0xff] %v114
        %474 = vst [vmem:[%s107 + $0xb30] sm:$0xff] %v114
        %475 = vst [vmem:[%s107 + $0xb38] sm:$0xff] %v114
        %476 = vst [vmem:[%s107 + $0xb40] sm:$0xff] %v114
        %477 = vst [vmem:[%s107 + $0xb48] sm:$0xff] %v114
        %478 = vst [vmem:[%s107 + $0xb50] sm:$0xff] %v114
        %479 = vst [vmem:[%s107 + $0xb58] sm:$0xff] %v114
        %480 = vst [vmem:[%s107 + $0xb60] sm:$0xff] %v114
        %481 = vst [vmem:[%s107 + $0xb68] sm:$0xff] %v114
        %482 = vst [vmem:[%s107 + $0xb70] sm:$0xff] %v114
        %483 = vst [vmem:[%s107 + $0xb78] sm:$0xff] %v114
        %484 = vst [vmem:[%s107 + $0xb80] sm:$0xff] %v114
        %485 = vst [vmem:[%s107 + $0xb88] sm:$0xff] %v114
        %486 = vst [vmem:[%s107 + $0xb90] sm:$0xff] %v114
        %487 = vst [vmem:[%s107 + $0xb98] sm:$0xff] %v114
        %488 = vst [vmem:[%s107 + $0xba0] sm:$0xff] %v114
        %489 = vst [vmem:[%s107 + $0xba8] sm:$0xff] %v114
        %490 = vst [vmem:[%s107 + $0xbb0] sm:$0xff] %v114
        %491 = vst [vmem:[%s107 + $0xbb8] sm:$0xff] %v114
        %492 = vst [vmem:[%s107 + $0xbc0] sm:$0xff] %v114
        %493 = vst [vmem:[%s107 + $0xbc8] sm:$0xff] %v114
        %494 = vst [vmem:[%s107 + $0xbd0] sm:$0xff] %v114
        %495 = vst [vmem:[%s107 + $0xbd8] sm:$0xff] %v114
        %496 = vst [vmem:[%s107 + $0xbe0] sm:$0xff] %v114
        %497 = vst [vmem:[%s107 + $0xbe8] sm:$0xff] %v114
        %498 = vst [vmem:[%s107 + $0xbf0] sm:$0xff] %v114
        %499 = vst [vmem:[%s107 + $0xbf8] sm:$0xff] %v114
        %500 = vst [vmem:[%s107 + $0xc00] sm:$0xff] %v114
        %501 = vst [vmem:[%s107 + $0xc08] sm:$0xff] %v114
        %502 = vst [vmem:[%s107 + $0xc10] sm:$0xff] %v114
        %503 = vst [vmem:[%s107 + $0xc18] sm:$0xff] %v114
        %504 = vst [vmem:[%s107 + $0xc20] sm:$0xff] %v114
        %505 = vst [vmem:[%s107 + $0xc28] sm:$0xff] %v114
        %506 = vst [vmem:[%s107 + $0xc30] sm:$0xff] %v114
        %507 = vst [vmem:[%s107 + $0xc38] sm:$0xff] %v114
        %508 = vst [vmem:[%s107 + $0xc40] sm:$0xff] %v114
        %509 = vst [vmem:[%s107 + $0xc48] sm:$0xff] %v114
        %510 = vst [vmem:[%s107 + $0xc50] sm:$0xff] %v114
        %511 = vst [vmem:[%s107 + $0xc58] sm:$0xff] %v114
        %512 = vst [vmem:[%s107 + $0xc60] sm:$0xff] %v114
        %513 = vst [vmem:[%s107 + $0xc68] sm:$0xff] %v114
        %514 = vst [vmem:[%s107 + $0xc70] sm:$0xff] %v114
        %515 = vst [vmem:[%s107 + $0xc78] sm:$0xff] %v114
        %516 = vst [vmem:[%s107 + $0xc80] sm:$0xff] %v114
        %517 = vst [vmem:[%s107 + $0xc88] sm:$0xff] %v114
        %518 = vst [vmem:[%s107 + $0xc90] sm:$0xff] %v114
        %519 = vst [vmem:[%s107 + $0xc98] sm:$0xff] %v114
        %520 = vst [vmem:[%s107 + $0xca0] sm:$0xff] %v114
        %521 = vst [vmem:[%s107 + $0xca8] sm:$0xff] %v114
        %522 = vst [vmem:[%s107 + $0xcb0] sm:$0xff] %v114
        %523 = vst [vmem:[%s107 + $0xcb8] sm:$0xff] %v114
        %524 = vst [vmem:[%s107 + $0xcc0] sm:$0xff] %v114
        %525 = vst [vmem:[%s107 + $0xcc8] sm:$0xff] %v114
        %526 = vst [vmem:[%s107 + $0xcd0] sm:$0xff] %v114
        %527 = vst [vmem:[%s107 + $0xcd8] sm:$0xff] %v114
        %528 = vst [vmem:[%s107 + $0xce0] sm:$0xff] %v114
        %529 = vst [vmem:[%s107 + $0xce8] sm:$0xff] %v114
        %530 = vst [vmem:[%s107 + $0xcf0] sm:$0xff] %v114
        %531 = vst [vmem:[%s107 + $0xcf8] sm:$0xff] %v114
        %532 = vst [vmem:[%s107 + $0xd00] sm:$0xff] %v114
        %533 = vst [vmem:[%s107 + $0xd08] sm:$0xff] %v114
        %534 = vst [vmem:[%s107 + $0xd10] sm:$0xff] %v114
        %535 = vst [vmem:[%s107 + $0xd18] sm:$0xff] %v114
        %536 = vst [vmem:[%s107 + $0xd20] sm:$0xff] %v114
        %537 = vst [vmem:[%s107 + $0xd28] sm:$0xff] %v114
        %538 = vst [vmem:[%s107 + $0xd30] sm:$0xff] %v114
        %539 = vst [vmem:[%s107 + $0xd38] sm:$0xff] %v114
        %540 = vst [vmem:[%s107 + $0xd40] sm:$0xff] %v114
        %541 = vst [vmem:[%s107 + $0xd48] sm:$0xff] %v114
        %542 = vst [vmem:[%s107 + $0xd50] sm:$0xff] %v114
        %543 = vst [vmem:[%s107 + $0xd58] sm:$0xff] %v114
        %544 = vst [vmem:[%s107 + $0xd60] sm:$0xff] %v114
        %545 = vst [vmem:[%s107 + $0xd68] sm:$0xff] %v114
        %546 = vst [vmem:[%s107 + $0xd70] sm:$0xff] %v114
        %547 = vst [vmem:[%s107 + $0xd78] sm:$0xff] %v114
        %548 = vst [vmem:[%s107 + $0xd80] sm:$0xff] %v114
        %549 = vst [vmem:[%s107 + $0xd88] sm:$0xff] %v114
        %550 = vst [vmem:[%s107 + $0xd90] sm:$0xff] %v114
        %551 = vst [vmem:[%s107 + $0xd98] sm:$0xff] %v114
        %552 = vst [vmem:[%s107 + $0xda0] sm:$0xff] %v114
        %553 = vst [vmem:[%s107 + $0xda8] sm:$0xff] %v114
        %554 = vst [vmem:[%s107 + $0xdb0] sm:$0xff] %v114
        %555 = vst [vmem:[%s107 + $0xdb8] sm:$0xff] %v114
        %556 = vst [vmem:[%s107 + $0xdc0] sm:$0xff] %v114
        %557 = vst [vmem:[%s107 + $0xdc8] sm:$0xff] %v114
        %558 = vst [vmem:[%s107 + $0xdd0] sm:$0xff] %v114
        %559 = vst [vmem:[%s107 + $0xdd8] sm:$0xff] %v114
        %560 = vst [vmem:[%s107 + $0xde0] sm:$0xff] %v114
        %561 = vst [vmem:[%s107 + $0xde8] sm:$0xff] %v114
        %562 = vst [vmem:[%s107 + $0xdf0] sm:$0xff] %v114
        %563 = vst [vmem:[%s107 + $0xdf8] sm:$0xff] %v114
        %564 = vst [vmem:[%s107 + $0xe00] sm:$0xff] %v114
        %565 = vst [vmem:[%s107 + $0xe08] sm:$0xff] %v114
        %566 = vst [vmem:[%s107 + $0xe10] sm:$0xff] %v114
        %567 = vst [vmem:[%s107 + $0xe18] sm:$0xff] %v114
        %568 = vst [vmem:[%s107 + $0xe20] sm:$0xff] %v114
        %569 = vst [vmem:[%s107 + $0xe28] sm:$0xff] %v114
        %570 = vst [vmem:[%s107 + $0xe30] sm:$0xff] %v114
        %571 = vst [vmem:[%s107 + $0xe38] sm:$0xff] %v114
        %572 = vst [vmem:[%s107 + $0xe40] sm:$0xff] %v114
        %573 = vst [vmem:[%s107 + $0xe48] sm:$0xff] %v114
        %574 = vst [vmem:[%s107 + $0xe50] sm:$0xff] %v114
        %575 = vst [vmem:[%s107 + $0xe58] sm:$0xff] %v114
        %576 = vst [vmem:[%s107 + $0xe60] sm:$0xff] %v114
        %577 = vst [vmem:[%s107 + $0xe68] sm:$0xff] %v114
        %578 = vst [vmem:[%s107 + $0xe70] sm:$0xff] %v114
        %579 = vst [vmem:[%s107 + $0xe78] sm:$0xff] %v114
        %580 = vst [vmem:[%s107 + $0xe80] sm:$0xff] %v114
        %581 = vst [vmem:[%s107 + $0xe88] sm:$0xff] %v114
        %582 = vst [vmem:[%s107 + $0xe90] sm:$0xff] %v114
        %583 = vst [vmem:[%s107 + $0xe98] sm:$0xff] %v114
        %584 = vst [vmem:[%s107 + $0xea0] sm:$0xff] %v114
        %585 = vst [vmem:[%s107 + $0xea8] sm:$0xff] %v114
        %586 = vst [vmem:[%s107 + $0xeb0] sm:$0xff] %v114
        %587 = vst [vmem:[%s107 + $0xeb8] sm:$0xff] %v114
        %588 = vst [vmem:[%s107 + $0xec0] sm:$0xff] %v114
        %589 = vst [vmem:[%s107 + $0xec8] sm:$0xff] %v114
        %590 = vst [vmem:[%s107 + $0xed0] sm:$0xff] %v114
        %591 = vst [vmem:[%s107 + $0xed8] sm:$0xff] %v114
        %592 = vst [vmem:[%s107 + $0xee0] sm:$0xff] %v114
        %593 = vst [vmem:[%s107 + $0xee8] sm:$0xff] %v114
        %594 = vst [vmem:[%s107 + $0xef0] sm:$0xff] %v114
        %595 = vst [vmem:[%s107 + $0xef8] sm:$0xff] %v114
        %596 = vst [vmem:[%s107 + $0xf00] sm:$0xff] %v114
        %597 = vst [vmem:[%s107 + $0xf08] sm:$0xff] %v114
        %598 = vst [vmem:[%s107 + $0xf10] sm:$0xff] %v114
        %599 = vst [vmem:[%s107 + $0xf18] sm:$0xff] %v114
        %600 = vst [vmem:[%s107 + $0xf20] sm:$0xff] %v114
        %601 = vst [vmem:[%s107 + $0xf28] sm:$0xff] %v114
        %602 = vst [vmem:[%s107 + $0xf30] sm:$0xff] %v114
        %603 = vst [vmem:[%s107 + $0xf38] sm:$0xff] %v114
        %604 = vst [vmem:[%s107 + $0xf40] sm:$0xff] %v114
        %605 = vst [vmem:[%s107 + $0xf48] sm:$0xff] %v114
        %606 = vst [vmem:[%s107 + $0xf50] sm:$0xff] %v114
        %607 = vst [vmem:[%s107 + $0xf58] sm:$0xff] %v114
        %608 = vst [vmem:[%s107 + $0xf60] sm:$0xff] %v114
        %609 = vst [vmem:[%s107 + $0xf68] sm:$0xff] %v114
        %610 = vst [vmem:[%s107 + $0xf70] sm:$0xff] %v114
        %611 = vst [vmem:[%s107 + $0xf78] sm:$0xff] %v114
        %612 = vst [vmem:[%s107 + $0xf80] sm:$0xff] %v114
        %613 = vst [vmem:[%s107 + $0xf88] sm:$0xff] %v114
        %614 = vst [vmem:[%s107 + $0xf90] sm:$0xff] %v114
        %615 = vst [vmem:[%s107 + $0xf98] sm:$0xff] %v114
        %616 = vst [vmem:[%s107 + $0xfa0] sm:$0xff] %v114
        %617 = vst [vmem:[%s107 + $0xfa8] sm:$0xff] %v114
        %618 = vst [vmem:[%s107 + $0xfb0] sm:$0xff] %v114
        %619 = vst [vmem:[%s107 + $0xfb8] sm:$0xff] %v114
        %620 = vst [vmem:[%s107 + $0xfc0] sm:$0xff] %v114
        %621 = vst [vmem:[%s107 + $0xfc8] sm:$0xff] %v114
        %622 = vst [vmem:[%s107 + $0xfd0] sm:$0xff] %v114
        %623 = vst [vmem:[%s107 + $0xfd8] sm:$0xff] %v114
        %624 = vst [vmem:[%s107 + $0xfe0] sm:$0xff] %v114
        %625 = vst [vmem:[%s107 + $0xfe8] sm:$0xff] %v114
        %626 = vst [vmem:[%s107 + $0xff0] sm:$0xff] %v114
        %627 = vst [vmem:[%s107 + $0xff8] sm:$0xff] %v114
        %s628 = sand.u32 %s45, 1
        %s629 = scalar_lea.sflag [#allocation4], %s628
        %s630 = sand.u32 %s45, 1
        %s631 = smul.addr %s630, 4096
        %s632 = scalar_lea.vmem [#allocation5], %s631
        // Predicated region
        $region29: #{tpu_custom_call.1} parent=23 // pred_check
          %p633 = pneg %p55
        $region30: #{tpu_custom_call.1} parent=23 // pred_check_branch
          %635 = sbr.rel (%p633) target = $region32
        $region31: #{tpu_custom_call.1} parent=23 // pred_region
          %s636 = smul.u32 512, %s16
          %s638 = ssub.s32 65536, 65536
          %639 = vsyncadd %s629, %s638
          %s640 = smul.addr %s636, 128
          %s641 = scalar_lea.hbm %s1, %s640
          %s642 = sshll.u32 %s632, 4
          %s643 = int_to_ptr.vmem [resolvable:$true] %s642
          %648 = dma.vmem_to_hbm [thread:$0]  %s643, 65536, %s641, %s629, 128, 128, 8
        $region32: #{tpu_custom_call.1} parent=23 // pred_fallthru
          _
      $region24: #{tpu_custom_call.1} parent=5 // pred_fallthru
        _
      %p649 = scmp.le.s32.totalorder 2, %s11
      // Predicated region
      $region33: #{tpu_custom_call.1} parent=5 // pred_check
        %p650 = pneg %p649
      $region34: #{tpu_custom_call.1} parent=5 // pred_check_branch
        %652 = sbr.rel (%p650) target = $region36
      $region35: #{tpu_custom_call.1} parent=5 // pred_region
        %s653 = ssub.s32 %s11, 2
        // Predicated region
        $region37: #{tpu_custom_call.1} parent=35 // pred_check
          %p654 = pneg %p61
        $region38: #{tpu_custom_call.1} parent=35 // pred_check_branch
          %656 = sbr.rel (%p654) target = $region40
        $region39: #{tpu_custom_call.1} parent=35 // pred_region
          %s657 = sand.u32 %s46, 1
          %s658 = scalar_lea.sflag [#allocation4], %s657
          %s659 = sand.u32 %s46, 1
          %s660 = smul.addr %s659, 4096
          %s661 = scalar_lea.vmem [#allocation5], %s660
          %662 = dma.done %s658, 65536
        $region40: #{tpu_custom_call.1} parent=35 // pred_fallthru
          _
      $region36: #{tpu_custom_call.1} parent=5 // pred_fallthru
        _
    $region6: #{tpu_custom_call.1} parent=1 // loop_footer
      %s15 = sadd.s32 1, %s11
    $region7: #{tpu_custom_call.1} parent=1 // loop_footer_branch
      %10 = sbr.rel target = $region3
    $region8: #{tpu_custom_call.1} parent=1 // loop_exit
      _
    %663 = vsyncpa [#allocation3], 1
    %s664 = scalar_lea.sflag [#allocation3], 1
    %665 = vsyncpa %s664, 1
    %666 = vsyncpa [#allocation4], 1
    %s667 = scalar_lea.sflag [#allocation4], 1
    %668 = vsyncpa %s667, 1

</llo_original>
